<compile_context>
chip_gen: v7x
topology: tpu7x:2x2x1
jax: 0.10.0
libtpu: 0.0.40
codegen_flags: <defaults>
</compile_context>

<pallas_src>
import math

import numpy as np

import jax
import jax.numpy as jnp
from jax.experimental import pallas as pl
from jax.experimental.pallas import tpu as pltpu


_SPLIT_THRESHOLD_ELEMS = 256 * 1024  # below this a single block is cheapest


def _get_mask_kernel(pad_ref, x_ref, o_ref):
    # Elementwise (x != pad) on the VPU. jnp promotion upcasts packed dtypes
    # (int8 / bf16 / f16) in-register; HBM traffic stays at native width.
    o_ref[...] = (x_ref[...] != pad_ref[0]).astype(o_ref.dtype)


def _min_sublane(dtype):
    # Minimum second-to-last tile dim: 8 for 32-bit, 16 for 16-bit, 32 for 8-bit.
    return {4: 8, 2: 16, 1: 32}.get(np.dtype(dtype).itemsize, 8)


def _pick_lane(total):
    """Largest lane width dividing `total`; prefer multiples of 128 (lane-dense)."""
    for lane in range(1024, 0, -128):
        if total % lane == 0:
            return lane
    for lane in range(min(total, 1024), 0, -1):
        if total % lane == 0:
            return lane
    return 1


def _vmem_capacity_bytes():
    try:
        return int(pltpu.get_tpu_info().vmem_capacity_bytes)
    except Exception:
        return 64 * 1024 * 1024  # conservative: v7x per-TC physical VMEM


def _target_block_elems(bytes_per_elem, vmem_cap):
    # v7x (<=64 MiB VMEM, ~3.2 TB/s HBM per TC) wants ~2M-element blocks so the
    # ~0.35us per-grid-step overhead stays a few percent; v5e/v6e (128 MiB
    # VMEM) are already ~85%+ of roofline at ~1M elements.
    target = 2 * 1024 * 1024 if vmem_cap <= 64 * 1024 * 1024 else 1024 * 1024
    # Never plan more than ~half of physical VMEM for the pipeline buffers.
    target = min(target, (vmem_cap // 2) // max(bytes_per_elem, 1))
    return max(target, 8 * 1024)


def get_mask(x, pad_idx=0, mask_dtype=jnp.float32):
    """Returns (x != pad_idx).astype(mask_dtype), same shape as x (GetMask.forward)."""
    orig_shape = x.shape
    mask_dtype = np.dtype(mask_dtype)
    total = math.prod(orig_shape) if orig_shape else 1
    if total == 0:
        return jnp.zeros(orig_shape, mask_dtype)

    work = x
    if work.dtype == jnp.bool_:
        # TODO(synk): feed bool (PRED) blocks straight through once Mosaic i1
        # tiles are reliable; for now a cheap 1B->1B widen keeps it correct.
        work = work.astype(jnp.int8)

    # Pad value: cast to x's dtype first (bf16/f16 rounding matches torch.ne
    # evaluated in the source dtype), then carry it as a 32-bit SMEM scalar.
    if jnp.issubdtype(work.dtype, jnp.floating):
        pad_val = jnp.asarray(pad_idx, work.dtype).astype(jnp.float32)
    elif jnp.issubdtype(work.dtype, jnp.unsignedinteger):
        pad_val = jnp.asarray(pad_idx, jnp.uint32)
    else:
        pad_val = jnp.asarray(pad_idx, jnp.int32)
    pad_arr = pad_val.reshape(1)

    in_itemsize = np.dtype(work.dtype).itemsize
    out_itemsize = mask_dtype.itemsize
    vmem_cap = _vmem_capacity_bytes()
    target_elems = _target_block_elems(2 * (in_itemsize + out_itemsize), vmem_cap)

    lane = _pick_lane(total)
    rows = total // lane
    sub = max(_min_sublane(work.dtype), _min_sublane(mask_dtype))

    max_block_rows = max(sub, (target_elems // lane) // sub * sub)
    if rows <= max_block_rows:
        if total >= _SPLIT_THRESHOLD_ELEMS and rows >= 2 * sub:
            # Keep >= 2 grid steps so "parallel" can use both v7x TensorCores.
            half = -(-((rows + 1) // 2) // sub) * sub
            block_rows = min(rows, half)
        else:
            block_rows = rows  # full dim: legal regardless of sublane multiple
    else:
        block_rows = max_block_rows

    grid = (pl.cdiv(rows, block_rows),)  # last block may be partial: Pallas pads

    footprint = 2 * block_rows * lane * (in_itemsize + out_itemsize)
    vmem_limit = int(min(max(footprint + (8 << 20), 32 << 20), vmem_cap))

    x2d = jnp.ravel(work).reshape(rows, lane)  # metadata-only for contiguous layouts

    out2d = pl.pallas_call(
        _get_mask_kernel,
        out_shape=jax.ShapeDtypeStruct((rows, lane), mask_dtype),
        grid_spec=pltpu.PrefetchScalarGridSpec(
            num_scalar_prefetch=0,
            grid=grid,
            in_specs=[
                pl.BlockSpec(memory_space=pltpu.MemorySpace.SMEM),   # pad scalar
                pl.BlockSpec((block_rows, lane), lambda i: (i, 0)),  # x slab tile
            ],
            out_specs=pl.BlockSpec((block_rows, lane), lambda i: (i, 0)),
        ),
        compiler_params=pltpu.CompilerParams(
            dimension_semantics=("parallel",),  # shard blocks over v7x's 2 TCs
            vmem_limit_bytes=vmem_limit,
        ),
    )(pad_arr, x2d)

    return out2d.reshape(orig_shape)


if __name__ == "__main__":
    key = jax.random.PRNGKey(0)
    k0, k1, k2, k3 = jax.random.split(key, 4)

    get_mask_j = jax.jit(get_mask, static_argnames=("mask_dtype",))

    # 1) token-id-like int32 NCHW input with plenty of pad (0) entries.
    x = jax.random.randint(k0, (2, 4, 16, 16), 0, 5, dtype=jnp.int32)
    m = jax.block_until_ready(get_mask_j(x, 0))
    assert m.shape == x.shape and m.dtype == jnp.float32
    assert bool(jnp.all(m == (x != 0).astype(jnp.float32)))

    # Same compiled kernel, different pad value (runtime SMEM scalar).
    m3 = jax.block_until_ready(get_mask_j(x, 3))
    assert bool(jnp.all(m3 == (x != 3).astype(jnp.float32)))

    # 2) ragged float32 shape -> full-dim lane block, no padding / concat pass.
    xf = jax.random.normal(k1, (3, 7, 5), dtype=jnp.float32)
    mf = jax.block_until_ready(get_mask_j(xf, 0))
    assert bool(jnp.all(mf == (xf != 0.0).astype(jnp.float32)))

    # 3) native bf16 path (no wrapper-side upcast).
    xb = jax.random.normal(k2, (2, 4, 16, 16), dtype=jnp.bfloat16)
    xb = xb.at[0, 0, 0, :4].set(jnp.bfloat16(0))
    mb = jax.block_until_ready(get_mask_j(xb, 0))
    assert bool(jnp.all(mb == (xb != jnp.bfloat16(0)).astype(jnp.float32)))

    # 4) native int8 path.
    xi = jax.random.randint(k3, (2, 4, 16, 16), -3, 4, dtype=jnp.int8)
    mi = jax.block_until_ready(get_mask_j(xi, 0))
    assert bool(jnp.all(mi == (xi != 0).astype(jnp.float32)))

    # 5) larger ragged int32 input: multi-block grid with a partial last block.
    xl = jax.random.randint(k0, (520, 1000), 0, 3, dtype=jnp.int32)
    ml = jax.block_until_ready(get_mask_j(xl, 0))
    assert bool(jnp.all(ml == (xl != 0).astype(jnp.float32)))

    # 6) optional narrower mask output for fusion-friendly consumers.
    mbf16 = jax.block_until_ready(get_mask_j(x, 0, mask_dtype=jnp.bfloat16))
    assert mbf16.dtype == jnp.bfloat16
    assert bool(jnp.all(mbf16 == (x != 0).astype(jnp.bfloat16)))

    print("KERNEL_OK")
</pallas_src>

<mosaic_0001>
module attributes {stable_mosaic.version = 11 : i64} {
  func.func @_get_mask_kernel(%arg0: i32, %arg1: memref<1xi32, #tpu.memory_space<smem>>, %arg2: memref<2x1024xi32, #tpu.memory_space<vmem>>, %arg3: memref<2x1024xf32, #tpu.memory_space<vmem>>) attributes {dimension_semantics = [#tpu.dimension_semantics<parallel>], iteration_bounds = array<i64: 1>, scalar_prefetch = 0 : i64, scratch_operands = 0 : i64, tpu.core_type = #tpu.core_type<tc>, window_params = [{transform_indices = @transform_0, window_bounds = array<i64: 1>}, {transform_indices = @transform_1, window_bounds = array<i64: 2, 1024>}, {transform_indices = @transform_2, window_bounds = array<i64: 2, 1024>}]} {
    %c0 = arith.constant 0 : index
    %c0_0 = arith.constant 0 : index
    %0 = vector.load %arg2[%c0, %c0_0] : memref<2x1024xi32, #tpu.memory_space<vmem>>, vector<2x1024xi32>
    %c0_1 = arith.constant 0 : index
    %1 = memref.load %arg1[%c0_1] : memref<1xi32, #tpu.memory_space<smem>>
    %2 = vector.broadcast %1 : i32 to vector<2x1024xi32>
    %3 = arith.cmpi ne, %0, %2 : vector<2x1024xi32>
    %4 = arith.extui %3 : vector<2x1024xi1> to vector<2x1024xi32>
    %5 = arith.sitofp %4 : vector<2x1024xi32> to vector<2x1024xf32>
    %c0_2 = arith.constant 0 : index
    %c0_3 = arith.constant 0 : index
    %6 = vector.load %arg3[%c0_2, %c0_3] : memref<2x1024xf32, #tpu.memory_space<vmem>>, vector<2x1024xf32>
    tpu.vector_store %arg3[%c0_2, %c0_3], %5 {strides = array<i32>} : memref<2x1024xf32, #tpu.memory_space<vmem>>, vector<2x1024xf32>,
    return
  }
  func.func @transform_0(%arg0: i32) -> i32 {
    %c0_i32 = arith.constant 0 : i32
    %c0_i32_0 = arith.constant 0 : i32
    return %c0_i32 : i32
  }
  func.func @transform_1(%arg0: i32) -> (i32, i32) {
    %c0_i32 = arith.constant 0 : i32
    %c0_i32_0 = arith.constant 0 : i32
    return %arg0, %c0_i32 : i32, i32
  }
  func.func @transform_2(%arg0: i32) -> (i32, i32) {
    %c0_i32 = arith.constant 0 : i32
    %c0_i32_0 = arith.constant 0 : i32
    return %arg0, %c0_i32 : i32, i32
  }
}

</mosaic_0001>

<llo_original>
// kernel: get_mask.1
$region0: #{get_mask.1}
  #allocation0 [shape = 'u32[]', space=smem, size = 0x4, offset = 0x4, fixed_abs, tag = 'smem constant byte address 0x4 - core index']
  #allocation1 [shape = 'u32[144,128]{1,0:T(1,128)}', space=vmem, size = 0x12000, scoped, tag = 'internal scratch']
  #allocation2 [shape = 's32[1]{0:T(128)S(6)}', space=smem, size = 0x200, scoped, tag = 'scoped memory for get_mask.1']
  %s0 = inlined_call_operand.<no memory space> [shape: s32[1], index: 0, kind: input, shape index: {}]
  %s1 = inlined_call_operand.vmem [shape: s32[2,1024], index: 1, kind: input, shape index: {}]
  %s2 = inlined_call_operand.vmem [shape: f32[2,1024], index: 2, kind: output, shape index: {}]
  %s3 = sld [smem:[#allocation0]]
  $region18: #{get_mask.1} parent=0
    _
  %s5 = ssub.s32 1, %s3
  %s6 = scalar_select 0, %s5, %s3
  %7 = sst [smem:[#allocation2]] %s0
  // Predicated region
  $region2: #{get_mask.1} parent=0 // pred_check
    _
  $region3: #{get_mask.1} parent=0 // pred_check_branch
    %9 = sbr.rel (0) target = $region5
  $region4: #{get_mask.1} parent=0 // pred_region
    _
  $region5: #{get_mask.1} parent=0 // pred_fallthru
    _
  // Predicated region
  $region6: #{get_mask.1} parent=0 // pred_check
    _
  $region7: #{get_mask.1} parent=0 // pred_check_branch
    %11 = sbr.rel (0) target = $region9
  $region8: #{get_mask.1} parent=0 // pred_region
    _
  $region9: #{get_mask.1} parent=0 // pred_fallthru
    _
  %v12 = vld [vmem:[%s1] sm:$0xff]
  %v13 = vld [vmem:[%s1 + $0x8] sm:$0xff]
  %s14 = sld [smem:[#allocation2]]
  %v15 = vstv %s14
  %vm16 = vcmp.ne.s32.totalorder %v12, %v15
  %vm17 = vcmp.ne.s32.totalorder %v13, %v15
  %v18 = vsel %vm16, 1, 0
  %v19 = vsel %vm17, 1, 0
  %v20 = vcvt.s32.f32 %v18
  %v21 = vcvt.s32.f32 %v19
  %22 = vst [vmem:[%s2] sm:$0xff] %v20
  %23 = vst [vmem:[%s2 + $0x8] sm:$0xff] %v21
  // Predicated region
  $region10: #{get_mask.1} parent=0 // pred_check
    _
  $region11: #{get_mask.1} parent=0 // pred_check_branch
    %25 = sbr.rel (0) target = $region13
  $region12: #{get_mask.1} parent=0 // pred_region
    _
  $region13: #{get_mask.1} parent=0 // pred_fallthru
    _
  // Predicated region
  $region14: #{get_mask.1} parent=0 // pred_check
    _
  $region15: #{get_mask.1} parent=0 // pred_check_branch
    %27 = sbr.rel (0) target = $region17
  $region16: #{get_mask.1} parent=0 // pred_region
    _
  $region17: #{get_mask.1} parent=0 // pred_fallthru
    _

</llo_original>
